<compile_context>
chip_gen: v7x
topology: tpu7x:2x2x1
jax: 0.10.0
libtpu: 0.0.40
codegen_flags: <defaults>
</compile_context>

<pallas_src>
import jax
import jax.numpy as jnp
from jax.experimental import pallas as pl
from jax.experimental.pallas import tpu as pltpu

IN_DIM = 784
OUT_DIM = 10      # true logits width
OUT_PAD = 128     # lane-dense padded output width


def _round_up(n, m):
    return ((n + m - 1) // m) * m


def _choose_tile_b(B, max_tile=512):
    """Adaptive batch tile.

    - B <= 128: one block equal to the full batch (no padding, no waste).
    - 128 < B <= max_tile: split into ~2 tiles (16-row aligned) so both v7x
      TensorCores get work; no-op cost on single-TC v5e/v6e.
    - B > max_tile: 512-row tiles (memory-roofline sweet spot).
    """
    if B <= 128:
        return B
    if B <= max_tile:
        return _round_up(pl.cdiv(B, 2), 16)
    return max_tile


def _mlp_kernel(x_ref, w1_ref, b1_ref, w2_ref, b2_ref, w3_ref, b3_ref, o_ref):
    # x arrives as f32 (streamed straight from the caller's array); cast to
    # bf16 in-register right before the MXU pass — no HBM-side copy of x.
    x = x_ref[...].astype(jnp.bfloat16)
    # Layer 1: (tile_b, 784) @ (784, 128), bf16 operands, f32 accumulate.
    h1 = jnp.dot(x, w1_ref[...], preferred_element_type=jnp.float32)
    h1 = jnp.maximum(h1 + b1_ref[...], 0.0)            # bias + ReLU in f32
    # Layer 2: (tile_b, 128) @ (128, 256)
    h2 = jnp.dot(h1.astype(jnp.bfloat16), w2_ref[...],
                 preferred_element_type=jnp.float32)
    h2 = jnp.maximum(h2 + b2_ref[...], 0.0)
    # Output layer (padded to 128 lanes): (tile_b, 256) @ (256, 128)
    o = jnp.dot(h2.astype(jnp.bfloat16), w3_ref[...],
                preferred_element_type=jnp.float32)
    o_ref[...] = (o + b3_ref[...]).astype(o_ref.dtype)  # bf16 lane-dense store


def minst_nn_forward(x, params, *, max_tile_b=512):
    """x: (B, 784) float32. params: dict of w1,b1,w2,b2,w3,b3 (biases (1, out)).

    Returns (B, 10) float32 logits (same math as the torch module's forward).
    """
    B, K = x.shape
    assert K == IN_DIM

    tile_b = _choose_tile_b(B, max_tile_b)
    n_tiles = pl.cdiv(B, tile_b)

    # Weights in bf16 (tiny, VMEM-resident across the whole grid); biases f32.
    w1 = params["w1"].astype(jnp.bfloat16)                      # (784, 128)
    w2 = params["w2"].astype(jnp.bfloat16)                      # (128, 256)
    w3 = jnp.pad(params["w3"],
                 ((0, 0), (0, OUT_PAD - OUT_DIM))).astype(jnp.bfloat16)  # (256, 128)
    b1 = params["b1"]                                           # (1, 128) f32
    b2 = params["b2"]                                           # (1, 256) f32
    b3 = jnp.pad(params["b3"], ((0, 0), (0, OUT_PAD - OUT_DIM)))  # (1, 128) f32

    resident = lambda shape: pl.BlockSpec(shape, lambda i: (0, 0))

    out_padded = pl.pallas_call(
        _mlp_kernel,
        out_shape=jax.ShapeDtypeStruct((B, OUT_PAD), jnp.bfloat16),
        grid=(n_tiles,),
        in_specs=[
            pl.BlockSpec((tile_b, IN_DIM), lambda i: (i, 0)),   # x tile (streamed f32)
            resident(w1.shape),
            resident(b1.shape),
            resident(w2.shape),
            resident(b2.shape),
            resident(w3.shape),
            resident(b3.shape),
        ],
        out_specs=pl.BlockSpec((tile_b, OUT_PAD), lambda i: (i, 0)),
        compiler_params=pltpu.CompilerParams(
            dimension_semantics=("parallel",),   # shard batch tiles across TCs
            vmem_limit_bytes=32 << 20,
        ),
    )(x, w1, b1, w2, b2, w3, b3)

    # Slice away the 118 dead lanes and give the consumer f32 logits.
    return out_padded[:, :OUT_DIM].astype(jnp.float32)


def init_params(key):
    """Deterministic init matching the torch module's layer shapes.
    Uses uniform(-1/sqrt(fan_in), 1/sqrt(fan_in)) like nn.Linear defaults."""
    def linear(key, fan_in, fan_out):
        kw, kb = jax.random.split(key)
        bound = 1.0 / jnp.sqrt(jnp.float32(fan_in))
        w = jax.random.uniform(kw, (fan_in, fan_out), jnp.float32, -bound, bound)
        b = jax.random.uniform(kb, (1, fan_out), jnp.float32, -bound, bound)
        return w, b

    k1, k2, k3 = jax.random.split(key, 3)
    w1, b1 = linear(k1, 784, 128)
    w2, b2 = linear(k2, 128, 256)
    w3, b3 = linear(k3, 256, 10)
    return {"w1": w1, "b1": b1, "w2": w2, "b2": b2, "w3": w3, "b3": b3}


if __name__ == "__main__":
    key = jax.random.PRNGKey(0)
    kx, kp = jax.random.split(key)

    B = 8  # small batch -> a single (8, 784) full-dims block, no padding
    x = jax.random.normal(kx, (B, IN_DIM), jnp.float32)
    params = init_params(kp)

    out = minst_nn_forward(x, params)
    out = jax.block_until_ready(out)

    # Reference check in plain f32 JAX (kernel uses bf16 matmul operands with
    # f32 accumulation and a bf16 output store, so tolerance is loosened).
    def ref(xx, p):
        h1 = jnp.maximum(xx @ p["w1"] + p["b1"], 0.0)
        h2 = jnp.maximum(h1 @ p["w2"] + p["b2"], 0.0)
        return h2 @ p["w3"] + p["b3"]

    expected = ref(x, params)
    assert out.shape == (B, OUT_DIM)
    assert jnp.allclose(out, expected, atol=2e-2, rtol=2e-2), (
        float(jnp.max(jnp.abs(out - expected))))

    print("KERNEL_OK")
</pallas_src>

<mosaic_0001>
module attributes {stable_mosaic.version = 11 : i64} {
  func.func @_mlp_kernel(%arg0: i32, %arg1: memref<8x784xf32, #tpu.memory_space<vmem>>, %arg2: memref<784x128xbf16, #tpu.memory_space<vmem>>, %arg3: memref<1x128xf32, #tpu.memory_space<vmem>>, %arg4: memref<128x256xbf16, #tpu.memory_space<vmem>>, %arg5: memref<1x256xf32, #tpu.memory_space<vmem>>, %arg6: memref<256x128xbf16, #tpu.memory_space<vmem>>, %arg7: memref<1x128xf32, #tpu.memory_space<vmem>>, %arg8: memref<8x128xbf16, #tpu.memory_space<vmem>>) attributes {dimension_semantics = [#tpu.dimension_semantics<parallel>], iteration_bounds = array<i64: 1>, scalar_prefetch = 0 : i64, scratch_operands = 0 : i64, tpu.core_type = #tpu.core_type<tc>, window_params = [{transform_indices = @transform_0, window_bounds = array<i64: 8, 784>}, {pipeline_mode = #tpu.pipeline_mode<synchronous>, transform_indices = @transform_1, window_bounds = array<i64: 784, 128>}, {pipeline_mode = #tpu.pipeline_mode<synchronous>, transform_indices = @transform_2, window_bounds = array<i64: 1, 128>}, {pipeline_mode = #tpu.pipeline_mode<synchronous>, transform_indices = @transform_3, window_bounds = array<i64: 128, 256>}, {pipeline_mode = #tpu.pipeline_mode<synchronous>, transform_indices = @transform_4, window_bounds = array<i64: 1, 256>}, {pipeline_mode = #tpu.pipeline_mode<synchronous>, transform_indices = @transform_5, window_bounds = array<i64: 256, 128>}, {pipeline_mode = #tpu.pipeline_mode<synchronous>, transform_indices = @transform_6, window_bounds = array<i64: 1, 128>}, {transform_indices = @transform_7, window_bounds = array<i64: 8, 128>}]} {
    %c0 = arith.constant 0 : index
    %c0_0 = arith.constant 0 : index
    %0 = vector.load %arg1[%c0, %c0_0] : memref<8x784xf32, #tpu.memory_space<vmem>>, vector<8x784xf32>
    %1 = arith.truncf %0 : vector<8x784xf32> to vector<8x784xbf16>
    %c0_1 = arith.constant 0 : index
    %c0_2 = arith.constant 0 : index
    %2 = vector.load %arg2[%c0_1, %c0_2] : memref<784x128xbf16, #tpu.memory_space<vmem>>, vector<784x128xbf16>
    %cst = arith.constant dense<0.000000e+00> : vector<8x128xf32>
    %3 = tpu.matmul %1, %2, %cst {dimension_numbers = #tpu.dot_dimension_numbers<[1], [0], [0], [1], [0, 0, 1, 1], [], []>} : vector<8x784xbf16>, vector<784x128xbf16>, vector<8x128xf32> -> vector<8x128xf32>
    %c0_3 = arith.constant 0 : index
    %c0_4 = arith.constant 0 : index
    %4 = vector.load %arg3[%c0_3, %c0_4] : memref<1x128xf32, #tpu.memory_space<vmem>>, vector<1x128xf32>
    %5 = vector.broadcast %4 : vector<1x128xf32> to vector<8x128xf32>
    %6 = arith.addf %3, %5 : vector<8x128xf32>
    %cst_5 = arith.constant 0.000000e+00 : f32
    %7 = vector.broadcast %cst_5 : f32 to vector<8x128xf32>
    %8 = arith.maximumf %6, %7 : vector<8x128xf32>
    %9 = arith.truncf %8 : vector<8x128xf32> to vector<8x128xbf16>
    %c0_6 = arith.constant 0 : index
    %c0_7 = arith.constant 0 : index
    %10 = vector.load %arg4[%c0_6, %c0_7] : memref<128x256xbf16, #tpu.memory_space<vmem>>, vector<128x256xbf16>
    %cst_8 = arith.constant dense<0.000000e+00> : vector<8x256xf32>
    %11 = tpu.matmul %9, %10, %cst_8 {dimension_numbers = #tpu.dot_dimension_numbers<[1], [0], [0], [1], [0, 0, 1, 1], [], []>} : vector<8x128xbf16>, vector<128x256xbf16>, vector<8x256xf32> -> vector<8x256xf32>
    %c0_9 = arith.constant 0 : index
    %c0_10 = arith.constant 0 : index
    %12 = vector.load %arg5[%c0_9, %c0_10] : memref<1x256xf32, #tpu.memory_space<vmem>>, vector<1x256xf32>
    %13 = vector.broadcast %12 : vector<1x256xf32> to vector<8x256xf32>
    %14 = arith.addf %11, %13 : vector<8x256xf32>
    %cst_11 = arith.constant 0.000000e+00 : f32
    %15 = vector.broadcast %cst_11 : f32 to vector<8x256xf32>
    %16 = arith.maximumf %14, %15 : vector<8x256xf32>
    %17 = arith.truncf %16 : vector<8x256xf32> to vector<8x256xbf16>
    %c0_12 = arith.constant 0 : index
    %c0_13 = arith.constant 0 : index
    %18 = vector.load %arg6[%c0_12, %c0_13] : memref<256x128xbf16, #tpu.memory_space<vmem>>, vector<256x128xbf16>
    %cst_14 = arith.constant dense<0.000000e+00> : vector<8x128xf32>
    %19 = tpu.matmul %17, %18, %cst_14 {dimension_numbers = #tpu.dot_dimension_numbers<[1], [0], [0], [1], [0, 0, 1, 1], [], []>} : vector<8x256xbf16>, vector<256x128xbf16>, vector<8x128xf32> -> vector<8x128xf32>
    %c0_15 = arith.constant 0 : index
    %c0_16 = arith.constant 0 : index
    %20 = vector.load %arg7[%c0_15, %c0_16] : memref<1x128xf32, #tpu.memory_space<vmem>>, vector<1x128xf32>
    %21 = vector.broadcast %20 : vector<1x128xf32> to vector<8x128xf32>
    %22 = arith.addf %19, %21 : vector<8x128xf32>
    %23 = arith.truncf %22 : vector<8x128xf32> to vector<8x128xbf16>
    %c0_17 = arith.constant 0 : index
    %c0_18 = arith.constant 0 : index
    %24 = vector.load %arg8[%c0_17, %c0_18] : memref<8x128xbf16, #tpu.memory_space<vmem>>, vector<8x128xbf16>
    tpu.vector_store %arg8[%c0_17, %c0_18], %23 {strides = array<i32>} : memref<8x128xbf16, #tpu.memory_space<vmem>>, vector<8x128xbf16>,
    return
  }
  func.func @transform_0(%arg0: i32) -> (i32, i32) {
    %c0_i32 = arith.constant 0 : i32
    %c0_i32_0 = arith.constant 0 : i32
    return %arg0, %c0_i32 : i32, i32
  }
  func.func @transform_1(%arg0: i32) -> (i32, i32) {
    %c0_i32 = arith.constant 0 : i32
    %c0_i32_0 = arith.constant 0 : i32
    %c0_i32_1 = arith.constant 0 : i32
    return %c0_i32, %c0_i32_0 : i32, i32
  }
  func.func @transform_2(%arg0: i32) -> (i32, i32) {
    %c0_i32 = arith.constant 0 : i32
    %c0_i32_0 = arith.constant 0 : i32
    %c0_i32_1 = arith.constant 0 : i32
    return %c0_i32, %c0_i32_0 : i32, i32
  }
  func.func @transform_3(%arg0: i32) -> (i32, i32) {
    %c0_i32 = arith.constant 0 : i32
    %c0_i32_0 = arith.constant 0 : i32
    %c0_i32_1 = arith.constant 0 : i32
    return %c0_i32, %c0_i32_0 : i32, i32
  }
  func.func @transform_4(%arg0: i32) -> (i32, i32) {
    %c0_i32 = arith.constant 0 : i32
    %c0_i32_0 = arith.constant 0 : i32
    %c0_i32_1 = arith.constant 0 : i32
    return %c0_i32, %c0_i32_0 : i32, i32
  }
  func.func @transform_5(%arg0: i32) -> (i32, i32) {
    %c0_i32 = arith.constant 0 : i32
    %c0_i32_0 = arith.constant 0 : i32
    %c0_i32_1 = arith.constant 0 : i32
    return %c0_i32, %c0_i32_0 : i32, i32
  }
  func.func @transform_6(%arg0: i32) -> (i32, i32) {
    %c0_i32 = arith.constant 0 : i32
    %c0_i32_0 = arith.constant 0 : i32
    %c0_i32_1 = arith.constant 0 : i32
    return %c0_i32, %c0_i32_0 : i32, i32
  }
  func.func @transform_7(%arg0: i32) -> (i32, i32) {
    %c0_i32 = arith.constant 0 : i32
    %c0_i32_0 = arith.constant 0 : i32
    return %arg0, %c0_i32 : i32, i32
  }
}

</mosaic_0001>

<llo_original>
// kernel: tpu_custom_call.1
$region0: #{tpu_custom_call.1}
  #allocation0 [shape = 'u32[]', space=smem, size = 0x4, offset = 0x4, fixed_abs, tag = 'smem constant byte address 0x4 - core index']
  #allocation1 [shape = 'u32[144,128]{1,0:T(1,128)}', space=vmem, size = 0x12000, scoped, tag = 'internal scratch']
  %s0 = inlined_call_operand.hbm [shape: f32[8,784], index: 0, kind: input, shape index: {}]
  %s1 = inlined_call_operand.hbm [shape: bf16[784,128], index: 1, kind: input, shape index: {}]
  %s2 = inlined_call_operand.vmem [shape: f32[1,128], index: 2, kind: input, shape index: {}]
  %s3 = inlined_call_operand.hbm [shape: bf16[128,256], index: 3, kind: input, shape index: {}]
  %s4 = inlined_call_operand.vmem [shape: f32[1,256], index: 4, kind: input, shape index: {}]
  %s5 = inlined_call_operand.hbm [shape: bf16[256,128], index: 5, kind: input, shape index: {}]
  %s6 = inlined_call_operand.vmem [shape: f32[1,128], index: 6, kind: input, shape index: {}]
  %s7 = inlined_call_operand.hbm [shape: bf16[8,128], index: 7, kind: output, shape index: {}]
  %s8 = sld [smem:[#allocation0]]
  $region54: #{tpu_custom_call.1} parent=0
    _
  %s10 = ssub.s32 1, %s8
  %s11 = scalar_select 0, %s10, %s8
  $region1: #{tpu_custom_call.1} parent=0
    #allocation2 [shape = 'u8[28672]{0}', space=vmem, size = 0x7000, scoped, tag = 'input window, operand 0, single buffered']
    #allocation3 [shape = 's32[1]{0}', space=sflag, size = 0x4, scoped, tag = 'scoped memory for tpu_custom_call.1']
    #allocation4 [shape = 's32[1]{0}', space=sflag, size = 0x4, scoped, tag = 'scoped memory for tpu_custom_call.1']
    #allocation5 [shape = 'u8[200704]{0}', space=vmem, size = 0x31000, scoped, tag = 'input window, operand 1, single buffered']
    #allocation6 [shape = 's32[1]{0}', space=sflag, size = 0x4, scoped, tag = 'scoped memory for tpu_custom_call.1']
    #allocation7 [shape = 'u8[65536]{0}', space=vmem, size = 0x10000, scoped, tag = 'input window, operand 3, single buffered']
    #allocation8 [shape = 'u8[65536]{0}', space=vmem, size = 0x10000, scoped, tag = 'input window, operand 5, single buffered']
    #allocation9 [shape = 's32[1]{0}', space=sflag, size = 0x4, scoped, tag = 'scoped memory for tpu_custom_call.1']
    #allocation10 [shape = 'u8[2048]{0}', space=vmem, size = 0x800, scoped, tag = 'output window, operand 0, single buffered']
    %12 = vsyncpa [#allocation3], 0
    %13 = vsyncpa [#allocation6], 0
    %14 = vsyncpa [#allocation9], 0
    %15 = vsyncpa [#allocation4], 0
    // Predicated region
    $region2: #{tpu_custom_call.1} parent=1 // pred_check
      _
    $region3: #{tpu_custom_call.1} parent=1 // pred_check_branch
      %17 = sbr.rel (0) target = $region5
    $region4: #{tpu_custom_call.1} parent=1 // pred_region
      %s19 = ssub.s32 896, 896
      %20 = vsyncadd [#allocation3], %s19
      %s22 = sshll.u32 [#allocation2], 4
      %s23 = int_to_ptr.vmem [resolvable:$true] %s22
      %25 = dma.hbm_to_vmem [thread:$0]  %s0, 896, %s23, [#allocation3]
    $region5: #{tpu_custom_call.1} parent=1 // pred_fallthru
      _
    // Predicated region
    $region6: #{tpu_custom_call.1} parent=1 // pred_check
      _
    $region7: #{tpu_custom_call.1} parent=1 // pred_check_branch
      %27 = sbr.rel (0) target = $region9
    $region8: #{tpu_custom_call.1} parent=1 // pred_region
      %s29 = ssub.s32 6272, 6272
      %30 = vsyncadd [#allocation6], %s29
      %s31 = sshll.u32 [#allocation5], 4
      %s32 = int_to_ptr.vmem [resolvable:$true] %s31
      %37 = dma.hbm_to_vmem [thread:$0]  %s1, 6272, %s32, [#allocation6], 64, 64, 4
    $region9: #{tpu_custom_call.1} parent=1 // pred_fallthru
      _
    // Predicated region
    $region10: #{tpu_custom_call.1} parent=1 // pred_check
      _
    $region11: #{tpu_custom_call.1} parent=1 // pred_check_branch
      %39 = sbr.rel (0) target = $region13
    $region12: #{tpu_custom_call.1} parent=1 // pred_region
      _
    $region13: #{tpu_custom_call.1} parent=1 // pred_fallthru
      _
    // Predicated region
    $region14: #{tpu_custom_call.1} parent=1 // pred_check
      _
    $region15: #{tpu_custom_call.1} parent=1 // pred_check_branch
      %41 = sbr.rel (0) target = $region17
    $region16: #{tpu_custom_call.1} parent=1 // pred_region
      %s43 = ssub.s32 2048, 2048
      %44 = vsyncadd [#allocation6], %s43
      %s45 = sshll.u32 [#allocation7], 4
      %s46 = int_to_ptr.vmem [resolvable:$true] %s45
      %51 = dma.hbm_to_vmem [thread:$0]  %s3, 2048, %s46, [#allocation6], 128, 128, 8
    $region17: #{tpu_custom_call.1} parent=1 // pred_fallthru
      _
    // Predicated region
    $region18: #{tpu_custom_call.1} parent=1 // pred_check
      _
    $region19: #{tpu_custom_call.1} parent=1 // pred_check_branch
      %53 = sbr.rel (0) target = $region21
    $region20: #{tpu_custom_call.1} parent=1 // pred_region
      _
    $region21: #{tpu_custom_call.1} parent=1 // pred_fallthru
      _
    // Predicated region
    $region22: #{tpu_custom_call.1} parent=1 // pred_check
      _
    $region23: #{tpu_custom_call.1} parent=1 // pred_check_branch
      %55 = sbr.rel (0) target = $region25
    $region24: #{tpu_custom_call.1} parent=1 // pred_region
      %s57 = ssub.s32 2048, 2048
      %58 = vsyncadd [#allocation9], %s57
      %s59 = sshll.u32 [#allocation8], 4
      %s60 = int_to_ptr.vmem [resolvable:$true] %s59
      %65 = dma.hbm_to_vmem [thread:$0]  %s5, 2048, %s60, [#allocation9], 64, 64, 4
    $region25: #{tpu_custom_call.1} parent=1 // pred_fallthru
      _
    // Predicated region
    $region26: #{tpu_custom_call.1} parent=1 // pred_check
      _
    $region27: #{tpu_custom_call.1} parent=1 // pred_check_branch
      %67 = sbr.rel (0) target = $region29
    $region28: #{tpu_custom_call.1} parent=1 // pred_region
      _
    $region29: #{tpu_custom_call.1} parent=1 // pred_fallthru
      _
    // Predicated region
    $region30: #{tpu_custom_call.1} parent=1 // pred_check
      _
    $region31: #{tpu_custom_call.1} parent=1 // pred_check_branch
      %69 = sbr.rel (0) target = $region33
    $region32: #{tpu_custom_call.1} parent=1 // pred_region
      %70 = dma.done [#allocation3], 896
    $region33: #{tpu_custom_call.1} parent=1 // pred_fallthru
      _
    // Predicated region
    $region34: #{tpu_custom_call.1} parent=1 // pred_check
      _
    $region35: #{tpu_custom_call.1} parent=1 // pred_check_branch
      %72 = sbr.rel (0) target = $region37
    $region36: #{tpu_custom_call.1} parent=1 // pred_region
      %73 = dma.done [#allocation6], 6272
    $region37: #{tpu_custom_call.1} parent=1 // pred_fallthru
      _
    // Predicated region
    $region38: #{tpu_custom_call.1} parent=1 // pred_check
      _
    $region39: #{tpu_custom_call.1} parent=1 // pred_check_branch
      %75 = sbr.rel (0) target = $region41
    $region40: #{tpu_custom_call.1} parent=1 // pred_region
      %76 = dma.done [#allocation6], 2048
    $region41: #{tpu_custom_call.1} parent=1 // pred_fallthru
      _
    // Predicated region
    $region42: #{tpu_custom_call.1} parent=1 // pred_check
      _
    $region43: #{tpu_custom_call.1} parent=1 // pred_check_branch
      %78 = sbr.rel (0) target = $region45
    $region44: #{tpu_custom_call.1} parent=1 // pred_region
      %79 = dma.done [#allocation9], 2048
    $region45: #{tpu_custom_call.1} parent=1 // pred_fallthru
      _
    %v81 = vld [vmem:[#allocation2] sm:$0xff]
    %v82 = vld [vmem:[#allocation2 + $0x8] sm:$0xff]
    %v83 = vld [vmem:[#allocation2 + $0x10] sm:$0xff]
    %v84 = vld [vmem:[#allocation2 + $0x18] sm:$0xff]
    %v85 = vld [vmem:[#allocation2 + $0x20] sm:$0xff]
    %v86 = vld [vmem:[#allocation2 + $0x28] sm:$0xff]
    %v87 = vld [vmem:[#allocation2 + $0x30] sm:$0xff]
    %v88 = vpack.c.bf16 %v81, %v81
    %v89 = vpack.c.bf16 %v82, %v82
    %v90 = vpack.c.bf16 %v83, %v83
    %v91 = vpack.c.bf16 %v84, %v84
    %v92 = vpack.c.bf16 %v85, %v85
    %v93 = vpack.c.bf16 %v86, %v86
    %v94 = vpack.c.bf16 %v87, %v87
    %v95 = vld [vmem:[#allocation5] sm:$0xf]
    %v96 = vld [vmem:[#allocation5 + $0x4] sm:$0xf]
    %v97 = vld [vmem:[#allocation5 + $0x8] sm:$0xf]
    %v98 = vld [vmem:[#allocation5 + $0xc] sm:$0xf]
    %v99 = vld [vmem:[#allocation5 + $0x10] sm:$0xf]
    %v100 = vld [vmem:[#allocation5 + $0x14] sm:$0xf]
    %v101 = vld [vmem:[#allocation5 + $0x18] sm:$0xf]
    %v102 = vld [vmem:[#allocation5 + $0x1c] sm:$0xf]
    %v103 = vld [vmem:[#allocation5 + $0x20] sm:$0xf]
    %v104 = vld [vmem:[#allocation5 + $0x24] sm:$0xf]
    %v105 = vld [vmem:[#allocation5 + $0x28] sm:$0xf]
    %v106 = vld [vmem:[#allocation5 + $0x2c] sm:$0xf]
    %v107 = vld [vmem:[#allocation5 + $0x30] sm:$0xf]
    %v108 = vld [vmem:[#allocation5 + $0x34] sm:$0xf]
    %v109 = vld [vmem:[#allocation5 + $0x38] sm:$0xf]
    %v110 = vld [vmem:[#allocation5 + $0x3c] sm:$0xf]
    %v111 = vld [vmem:[#allocation5 + $0x40] sm:$0xf]
    %v112 = vld [vmem:[#allocation5 + $0x44] sm:$0xf]
    %v113 = vld [vmem:[#allocation5 + $0x48] sm:$0xf]
    %v114 = vld [vmem:[#allocation5 + $0x4c] sm:$0xf]
    %v115 = vld [vmem:[#allocation5 + $0x50] sm:$0xf]
    %v116 = vld [vmem:[#allocation5 + $0x54] sm:$0xf]
    %v117 = vld [vmem:[#allocation5 + $0x58] sm:$0xf]
    %v118 = vld [vmem:[#allocation5 + $0x5c] sm:$0xf]
    %v119 = vld [vmem:[#allocation5 + $0x60] sm:$0xf]
    %v120 = vld [vmem:[#allocation5 + $0x64] sm:$0xf]
    %v121 = vld [vmem:[#allocation5 + $0x68] sm:$0xf]
    %v122 = vld [vmem:[#allocation5 + $0x6c] sm:$0xf]
    %v123 = vld [vmem:[#allocation5 + $0x70] sm:$0xf]
    %v124 = vld [vmem:[#allocation5 + $0x74] sm:$0xf]
    %v125 = vld [vmem:[#allocation5 + $0x78] sm:$0xf]
    %v126 = vld [vmem:[#allocation5 + $0x7c] sm:$0xf]
    %v127 = vld [vmem:[#allocation5 + $0x80] sm:$0xf]
    %v128 = vld [vmem:[#allocation5 + $0x84] sm:$0xf]
    %v129 = vld [vmem:[#allocation5 + $0x88] sm:$0xf]
    %v130 = vld [vmem:[#allocation5 + $0x8c] sm:$0xf]
    %v131 = vld [vmem:[#allocation5 + $0x90] sm:$0xf]
    %v132 = vld [vmem:[#allocation5 + $0x94] sm:$0xf]
    %v133 = vld [vmem:[#allocation5 + $0x98] sm:$0xf]
    %v134 = vld [vmem:[#allocation5 + $0x9c] sm:$0xf]
    %v135 = vld [vmem:[#allocation5 + $0xa0] sm:$0xf]
    %v136 = vld [vmem:[#allocation5 + $0xa4] sm:$0xf]
    %v137 = vld [vmem:[#allocation5 + $0xa8] sm:$0xf]
    %v138 = vld [vmem:[#allocation5 + $0xac] sm:$0xf]
    %v139 = vld [vmem:[#allocation5 + $0xb0] sm:$0xf]
    %v140 = vld [vmem:[#allocation5 + $0xb4] sm:$0xf]
    %v141 = vld [vmem:[#allocation5 + $0xb8] sm:$0xf]
    %v142 = vld [vmem:[#allocation5 + $0xbc] sm:$0xf]
    %v143 = vld [vmem:[#allocation5 + $0xc0] sm:$0xf]
    %v144 = vld [vmem:[#allocation5 + $0xc4] sm:$0xf]
    %v145 = vld [vmem:[#allocation5 + $0xc8] sm:$0xf]
    %v146 = vld [vmem:[#allocation5 + $0xcc] sm:$0xf]
    %v147 = vld [vmem:[#allocation5 + $0xd0] sm:$0xf]
    %v148 = vld [vmem:[#allocation5 + $0xd4] sm:$0xf]
    %v149 = vld [vmem:[#allocation5 + $0xd8] sm:$0xf]
    %v150 = vld [vmem:[#allocation5 + $0xdc] sm:$0xf]
    %v151 = vld [vmem:[#allocation5 + $0xe0] sm:$0xf]
    %v152 = vld [vmem:[#allocation5 + $0xe4] sm:$0xf]
    %v153 = vld [vmem:[#allocation5 + $0xe8] sm:$0xf]
    %v154 = vld [vmem:[#allocation5 + $0xec] sm:$0xf]
    %v155 = vld [vmem:[#allocation5 + $0xf0] sm:$0xf]
    %v156 = vld [vmem:[#allocation5 + $0xf4] sm:$0xf]
    %v157 = vld [vmem:[#allocation5 + $0xf8] sm:$0xf]
    %v158 = vld [vmem:[#allocation5 + $0xfc] sm:$0xf]
    %v159 = vld [vmem:[#allocation5 + $0x100] sm:$0xf]
    %v160 = vld [vmem:[#allocation5 + $0x104] sm:$0xf]
    %v161 = vld [vmem:[#allocation5 + $0x108] sm:$0xf]
    %v162 = vld [vmem:[#allocation5 + $0x10c] sm:$0xf]
    %v163 = vld [vmem:[#allocation5 + $0x110] sm:$0xf]
    %v164 = vld [vmem:[#allocation5 + $0x114] sm:$0xf]
    %v165 = vld [vmem:[#allocation5 + $0x118] sm:$0xf]
    %v166 = vld [vmem:[#allocation5 + $0x11c] sm:$0xf]
    %v167 = vld [vmem:[#allocation5 + $0x120] sm:$0xf]
    %v168 = vld [vmem:[#allocation5 + $0x124] sm:$0xf]
    %v169 = vld [vmem:[#allocation5 + $0x128] sm:$0xf]
    %v170 = vld [vmem:[#allocation5 + $0x12c] sm:$0xf]
    %v171 = vld [vmem:[#allocation5 + $0x130] sm:$0xf]
    %v172 = vld [vmem:[#allocation5 + $0x134] sm:$0xf]
    %v173 = vld [vmem:[#allocation5 + $0x138] sm:$0xf]
    %v174 = vld [vmem:[#allocation5 + $0x13c] sm:$0xf]
    %v175 = vld [vmem:[#allocation5 + $0x140] sm:$0xf]
    %v176 = vld [vmem:[#allocation5 + $0x144] sm:$0xf]
    %v177 = vld [vmem:[#allocation5 + $0x148] sm:$0xf]
    %v178 = vld [vmem:[#allocation5 + $0x14c] sm:$0xf]
    %v179 = vld [vmem:[#allocation5 + $0x150] sm:$0xf]
    %v180 = vld [vmem:[#allocation5 + $0x154] sm:$0xf]
    %v181 = vld [vmem:[#allocation5 + $0x158] sm:$0xf]
    %v182 = vld [vmem:[#allocation5 + $0x15c] sm:$0xf]
    %v183 = vld [vmem:[#allocation5 + $0x160] sm:$0xf]
    %v184 = vld [vmem:[#allocation5 + $0x164] sm:$0xf]
    %v185 = vld [vmem:[#allocation5 + $0x168] sm:$0xf]
    %v186 = vld [vmem:[#allocation5 + $0x16c] sm:$0xf]
    %v187 = vld [vmem:[#allocation5 + $0x170] sm:$0xf]
    %v188 = vld [vmem:[#allocation5 + $0x174] sm:$0xf]
    %v189 = vld [vmem:[#allocation5 + $0x178] sm:$0xf]
    %v190 = vld [vmem:[#allocation5 + $0x17c] sm:$0xf]
    %v191 = vld [vmem:[#allocation5 + $0x180] sm:$0xf]
    %v192 = vld [vmem:[#allocation5 + $0x184] sm:$0xf]
    %v193 = vld [vmem:[%s2] sm:$0x1]
    %v195 = vlaneseq
    %v196 = vshrl.u32 %v195, 7
    %v197 = vsub.s32 0, %v196
    %v198 = vrot.slane %v193, %v197
    %v298 = vunpack.c.l.b16 %v95
    %v299 = vunpack.c.l.b16 %v96
    %v300 = vunpack.c.l.b16 %v97
    %v301 = vunpack.c.l.b16 %v98
    %v302 = vunpack.c.l.b16 %v99
    %v303 = vunpack.c.l.b16 %v100
    %v304 = vunpack.c.l.b16 %v101
    %v305 = vunpack.c.l.b16 %v102
    %v306 = vunpack.c.l.b16 %v103
    %v307 = vunpack.c.l.b16 %v104
    %v308 = vunpack.c.l.b16 %v105
    %v309 = vunpack.c.l.b16 %v106
    %v310 = vunpack.c.l.b16 %v107
    %v311 = vunpack.c.l.b16 %v108
    %v312 = vunpack.c.l.b16 %v109
    %v313 = vunpack.c.l.b16 %v110
    %v314 = vunpack.c.l.b16 %v111
    %v315 = vunpack.c.l.b16 %v112
    %v316 = vunpack.c.l.b16 %v113
    %v317 = vunpack.c.l.b16 %v114
    %v318 = vunpack.c.l.b16 %v115
    %v319 = vunpack.c.l.b16 %v116
    %v320 = vunpack.c.l.b16 %v117
    %v321 = vunpack.c.l.b16 %v118
    %v322 = vunpack.c.l.b16 %v119
    %v323 = vunpack.c.l.b16 %v120
    %v324 = vunpack.c.l.b16 %v121
    %v325 = vunpack.c.l.b16 %v122
    %v326 = vunpack.c.l.b16 %v123
    %v327 = vunpack.c.l.b16 %v124
    %v328 = vunpack.c.l.b16 %v125
    %v329 = vunpack.c.l.b16 %v126
    %v330 = vunpack.c.l.b16 %v127
    %v331 = vunpack.c.l.b16 %v128
    %v332 = vunpack.c.l.b16 %v129
    %v333 = vunpack.c.l.b16 %v130
    %v334 = vunpack.c.l.b16 %v131
    %v335 = vunpack.c.l.b16 %v132
    %v336 = vunpack.c.l.b16 %v133
    %v337 = vunpack.c.l.b16 %v134
    %v338 = vunpack.c.l.b16 %v135
    %v339 = vunpack.c.l.b16 %v136
    %v340 = vunpack.c.l.b16 %v137
    %v341 = vunpack.c.l.b16 %v138
    %v342 = vunpack.c.l.b16 %v139
    %v343 = vunpack.c.l.b16 %v140
    %v344 = vunpack.c.l.b16 %v141
    %v345 = vunpack.c.l.b16 %v142
    %v346 = vunpack.c.l.b16 %v143
    %v347 = vunpack.c.l.b16 %v144
    %v348 = vunpack.c.l.b16 %v145
    %v349 = vunpack.c.l.b16 %v146
    %v350 = vunpack.c.l.b16 %v147
    %v351 = vunpack.c.l.b16 %v148
    %v352 = vunpack.c.l.b16 %v149
    %v353 = vunpack.c.l.b16 %v150
    %v354 = vunpack.c.l.b16 %v151
    %v355 = vunpack.c.l.b16 %v152
    %v356 = vunpack.c.l.b16 %v153
    %v357 = vunpack.c.l.b16 %v154
    %v358 = vunpack.c.l.b16 %v155
    %v359 = vunpack.c.l.b16 %v156
    %v360 = vunpack.c.l.b16 %v157
    %v361 = vunpack.c.l.b16 %v158
    %v362 = vunpack.c.l.b16 %v159
    %v363 = vunpack.c.l.b16 %v160
    %v364 = vunpack.c.l.b16 %v161
    %v365 = vunpack.c.l.b16 %v162
    %v366 = vunpack.c.l.b16 %v163
    %v367 = vunpack.c.l.b16 %v164
    %v368 = vunpack.c.l.b16 %v165
    %v369 = vunpack.c.l.b16 %v166
    %v370 = vunpack.c.l.b16 %v167
    %v371 = vunpack.c.l.b16 %v168
    %v372 = vunpack.c.l.b16 %v169
    %v373 = vunpack.c.l.b16 %v170
    %v374 = vunpack.c.l.b16 %v171
    %v375 = vunpack.c.l.b16 %v172
    %v376 = vunpack.c.l.b16 %v173
    %v377 = vunpack.c.l.b16 %v174
    %v378 = vunpack.c.l.b16 %v175
    %v379 = vunpack.c.l.b16 %v176
    %v380 = vunpack.c.l.b16 %v177
    %v381 = vunpack.c.l.b16 %v178
    %v382 = vunpack.c.l.b16 %v179
    %v383 = vunpack.c.l.b16 %v180
    %v384 = vunpack.c.l.b16 %v181
    %v385 = vunpack.c.l.b16 %v182
    %v386 = vunpack.c.l.b16 %v183
    %v387 = vunpack.c.l.b16 %v184
    %v388 = vunpack.c.l.b16 %v185
    %v389 = vunpack.c.l.b16 %v186
    %v390 = vunpack.c.l.b16 %v187
    %v391 = vunpack.c.l.b16 %v188
    %v392 = vunpack.c.l.b16 %v189
    %v393 = vunpack.c.l.b16 %v190
    %v394 = vunpack.c.l.b16 %v191
    %v395 = vunpack.c.l.b16 %v192
    %v396 = vpack.c.b16 %v299, %v298
    %v397 = vpack.c.b16 %v301, %v300
    %v398 = vpack.c.b16 %v303, %v302
    %v399 = vpack.c.b16 %v305, %v304
    %v400 = vpack.c.b16 %v307, %v306
    %v401 = vpack.c.b16 %v309, %v308
    %v402 = vpack.c.b16 %v311, %v310
    %v403 = vpack.c.b16 %v313, %v312
    %v404 = vpack.c.b16 %v315, %v314
    %v405 = vpack.c.b16 %v317, %v316
    %v406 = vpack.c.b16 %v319, %v318
    %v407 = vpack.c.b16 %v321, %v320
    %v408 = vpack.c.b16 %v323, %v322
    %v409 = vpack.c.b16 %v325, %v324
    %v410 = vpack.c.b16 %v327, %v326
    %v411 = vpack.c.b16 %v329, %v328
    %v412 = vpack.c.b16 %v331, %v330
    %v413 = vpack.c.b16 %v333, %v332
    %v414 = vpack.c.b16 %v335, %v334
    %v415 = vpack.c.b16 %v337, %v336
    %v416 = vpack.c.b16 %v339, %v338
    %v417 = vpack.c.b16 %v341, %v340
    %v418 = vpack.c.b16 %v343, %v342
    %v419 = vpack.c.b16 %v345, %v344
    %v420 = vpack.c.b16 %v347, %v346
    %v421 = vpack.c.b16 %v349, %v348
    %v422 = vpack.c.b16 %v351, %v350
    %v423 = vpack.c.b16 %v353, %v352
    %v424 = vpack.c.b16 %v355, %v354
    %v425 = vpack.c.b16 %v357, %v356
    %v426 = vpack.c.b16 %v359, %v358
    %v427 = vpack.c.b16 %v361, %v360
    %v428 = vpack.c.b16 %v363, %v362
    %v429 = vpack.c.b16 %v365, %v364
    %v430 = vpack.c.b16 %v367, %v366
    %v431 = vpack.c.b16 %v369, %v368
    %v432 = vpack.c.b16 %v371, %v370
    %v433 = vpack.c.b16 %v373, %v372
    %v434 = vpack.c.b16 %v375, %v374
    %v435 = vpack.c.b16 %v377, %v376
    %v436 = vpack.c.b16 %v379, %v378
    %v437 = vpack.c.b16 %v381, %v380
    %v438 = vpack.c.b16 %v383, %v382
    %v439 = vpack.c.b16 %v385, %v384
    %v440 = vpack.c.b16 %v387, %v386
    %v441 = vpack.c.b16 %v389, %v388
    %v442 = vpack.c.b16 %v391, %v390
    %v443 = vpack.c.b16 %v393, %v392
    %v444 = vpack.c.b16 %v395, %v394
    %vm494 = vcmask 130048
    %v496 = vsel %vm494, %v94, 0
    %498 = vmatprep.subr.bf16.mxu0 0
    %499 = vmatpush1.bf16.msra.mxu0 %v396
    %500 = vmatprep.subr.bf16.mxu0 0
    %501 = vmatpush1.bf16.msra.mxu0 %v397
    %502 = vmatprep.subr.bf16.mxu0 0
    %503 = vmatpush1.bf16.msra.mxu0 %v398
    %504 = vmatprep.subr.bf16.mxu0 0
    %505 = vmatpush1.bf16.msra.mxu0 %v399
    %506 = vmatprep.subr.bf16.mxu0 0
    %507 = vmatpush1.bf16.msra.mxu0 %v400
    %508 = vmatprep.subr.bf16.mxu0 0
    %509 = vmatpush1.bf16.msra.mxu0 %v401
    %510 = vmatprep.subr.bf16.mxu0 0
    %511 = vmatpush1.bf16.msra.mxu0 %v402
    %512 = vmatprep.subr.bf16.mxu0 0
    %513 = vmatpush1.bf16.msra.mxu0 %v403
    %514 = vmatprep.subr.bf16.mxu0 0
    %515 = vmatpush1.bf16.msra.mxu0 %v404
    %516 = vmatprep.subr.bf16.mxu0 0
    %517 = vmatpush1.bf16.msra.mxu0 %v405
    %518 = vmatprep.subr.bf16.mxu0 0
    %519 = vmatpush1.bf16.msra.mxu0 %v406
    %520 = vmatprep.subr.bf16.mxu0 0
    %521 = vmatpush1.bf16.msra.mxu0 %v407
    %522 = vmatprep.subr.bf16.mxu0 0
    %523 = vmatpush1.bf16.msra.mxu0 %v408
    %524 = vmatprep.subr.bf16.mxu0 0
    %525 = vmatpush1.bf16.msra.mxu0 %v409
    %526 = vmatprep.subr.bf16.mxu0 0
    %527 = vmatpush1.bf16.msra.mxu0 %v410
    %528 = vmatprep.subr.bf16.mxu0 0
    %529 = vmatpush1.bf16.msra.mxu0 %v411
    %530 = vmatprep.mubr.bf16.mxu0 %v89
    %531 = vmatmul.mubr.bf16.gmra.mrb[0].mxu0 %v88
    %v532 = vpop.f32.mrb[0].mxu0
    %v533 = vadd.f32 %v198, %v532
    %v534 = vpop.f32.mrb[0].mxu0
    %v535 = vpop.f32.mrb[0].mxu0
    %v536 = vpop.f32.mrb[0].mxu0
    %537 = vdwg.mxu0
    %538 = vmatprep.subr.bf16.mxu0 0
    %539 = vmatpush1.bf16.msra.mxu0 %v412
    %540 = vmatprep.subr.bf16.mxu0 0
    %541 = vmatpush1.bf16.msra.mxu0 %v413
    %542 = vmatprep.subr.bf16.mxu0 0
    %543 = vmatpush1.bf16.msra.mxu0 %v414
    %544 = vmatprep.subr.bf16.mxu0 0
    %545 = vmatpush1.bf16.msra.mxu0 %v415
    %546 = vmatprep.subr.bf16.mxu0 0
    %547 = vmatpush1.bf16.msra.mxu0 %v416
    %548 = vmatprep.subr.bf16.mxu0 0
    %549 = vmatpush1.bf16.msra.mxu0 %v417
    %550 = vmatprep.subr.bf16.mxu0 0
    %551 = vmatpush1.bf16.msra.mxu0 %v418
    %552 = vmatprep.subr.bf16.mxu0 0
    %553 = vmatpush1.bf16.msra.mxu0 %v419
    %554 = vmatprep.subr.bf16.mxu0 0
    %555 = vmatpush1.bf16.msra.mxu0 %v420
    %556 = vmatprep.subr.bf16.mxu0 0
    %557 = vmatpush1.bf16.msra.mxu0 %v421
    %558 = vmatprep.subr.bf16.mxu0 0
    %559 = vmatpush1.bf16.msra.mxu0 %v422
    %560 = vmatprep.subr.bf16.mxu0 0
    %561 = vmatpush1.bf16.msra.mxu0 %v423
    %562 = vmatprep.subr.bf16.mxu0 0
    %563 = vmatpush1.bf16.msra.mxu0 %v424
    %564 = vmatprep.subr.bf16.mxu0 0
    %565 = vmatpush1.bf16.msra.mxu0 %v425
    %566 = vmatprep.subr.bf16.mxu0 0
    %567 = vmatpush1.bf16.msra.mxu0 %v426
    %568 = vmatprep.subr.bf16.mxu0 0
    %569 = vmatpush1.bf16.msra.mxu0 %v427
    %570 = vmatprep.mubr.bf16.mxu0 %v91
    %571 = vmatmul.mubr.bf16.gmra.mrb[0].mxu0 %v90
    %v572 = vpop.f32.mrb[0].mxu0
    %v573 = vadd.f32 %v533, %v572
    %v574 = vpop.f32.mrb[0].mxu0
    %v575 = vpop.f32.mrb[0].mxu0
    %v576 = vpop.f32.mrb[0].mxu0
    %577 = vdwg.mxu0
    %578 = vmatprep.subr.bf16.mxu0 0
    %579 = vmatpush1.bf16.msra.mxu0 %v428
    %580 = vmatprep.subr.bf16.mxu0 0
    %581 = vmatpush1.bf16.msra.mxu0 %v429
    %582 = vmatprep.subr.bf16.mxu0 0
    %583 = vmatpush1.bf16.msra.mxu0 %v430
    %584 = vmatprep.subr.bf16.mxu0 0
    %585 = vmatpush1.bf16.msra.mxu0 %v431
    %586 = vmatprep.subr.bf16.mxu0 0
    %587 = vmatpush1.bf16.msra.mxu0 %v432
    %588 = vmatprep.subr.bf16.mxu0 0
    %589 = vmatpush1.bf16.msra.mxu0 %v433
    %590 = vmatprep.subr.bf16.mxu0 0
    %591 = vmatpush1.bf16.msra.mxu0 %v434
    %592 = vmatprep.subr.bf16.mxu0 0
    %593 = vmatpush1.bf16.msra.mxu0 %v435
    %594 = vmatprep.subr.bf16.mxu0 0
    %595 = vmatpush1.bf16.msra.mxu0 %v436
    %596 = vmatprep.subr.bf16.mxu0 0
    %597 = vmatpush1.bf16.msra.mxu0 %v437
    %598 = vmatprep.subr.bf16.mxu0 0
    %599 = vmatpush1.bf16.msra.mxu0 %v438
    %600 = vmatprep.subr.bf16.mxu0 0
    %601 = vmatpush1.bf16.msra.mxu0 %v439
    %602 = vmatprep.subr.bf16.mxu0 0
    %603 = vmatpush1.bf16.msra.mxu0 %v440
    %604 = vmatprep.subr.bf16.mxu0 0
    %605 = vmatpush1.bf16.msra.mxu0 %v441
    %606 = vmatprep.subr.bf16.mxu0 0
    %607 = vmatpush1.bf16.msra.mxu0 %v442
    %608 = vmatprep.subr.bf16.mxu0 0
    %609 = vmatpush1.bf16.msra.mxu0 %v443
    %610 = vmatprep.mubr.bf16.mxu0 %v93
    %611 = vmatmul.mubr.bf16.gmra.mrb[0].mxu0 %v92
    %v612 = vpop.f32.mrb[0].mxu0
    %v613 = vadd.f32 %v573, %v612
    %v614 = vpop.f32.mrb[0].mxu0
    %v615 = vpop.f32.mrb[0].mxu0
    %v616 = vpop.f32.mrb[0].mxu0
    %617 = vdwg.mxu0
    %618 = vmatprep.subr.bf16.mxu0 0
    %619 = vmatpush1.bf16.msra.mxu0 %v444
    %620 = vmatprep.subr.bf16.mxu0 0
    %621 = vmatpush1.bf16.msra.mxu0 0
    %622 = vmatprep.subr.bf16.mxu0 0
    %623 = vmatpush1.bf16.msra.mxu0 0
    %624 = vmatprep.subr.bf16.mxu0 0
    %625 = vmatpush1.bf16.msra.mxu0 0
    %626 = vmatprep.subr.bf16.mxu0 0
    %627 = vmatpush1.bf16.msra.mxu0 0
    %628 = vmatprep.subr.bf16.mxu0 0
    %629 = vmatpush1.bf16.msra.mxu0 0
    %630 = vmatprep.subr.bf16.mxu0 0
    %631 = vmatpush1.bf16.msra.mxu0 0
    %632 = vmatprep.subr.bf16.mxu0 0
    %633 = vmatpush1.bf16.msra.mxu0 0
    %634 = vmatprep.subr.bf16.mxu0 0
    %635 = vmatpush1.bf16.msra.mxu0 0
    %636 = vmatprep.subr.bf16.mxu0 0
    %637 = vmatpush1.bf16.msra.mxu0 0
    %638 = vmatprep.subr.bf16.mxu0 0
    %639 = vmatpush1.bf16.msra.mxu0 0
    %640 = vmatprep.subr.bf16.mxu0 0
    %641 = vmatpush1.bf16.msra.mxu0 0
    %642 = vmatprep.subr.bf16.mxu0 0
    %643 = vmatpush1.bf16.msra.mxu0 0
    %644 = vmatprep.subr.bf16.mxu0 0
    %645 = vmatpush1.bf16.msra.mxu0 0
    %646 = vmatprep.subr.bf16.mxu0 0
    %647 = vmatpush1.bf16.msra.mxu0 0
    %648 = vmatprep.subr.bf16.mxu0 0
    %649 = vmatpush1.bf16.msra.mxu0 0
    %650 = vmatprep.mubr.bf16.mxu0 0
    %651 = vmatmul.mubr.bf16.gmra.mrb[0].mxu0 %v496
    %v652 = vpop.f32.mrb[0].mxu0
    %v653 = vadd.f32 %v613, %v652
    %v654 = vpop.f32.mrb[0].mxu0
    %v655 = vpop.f32.mrb[0].mxu0
    %v656 = vpop.f32.mrb[0].mxu0
    %657 = vdwg.mxu0
    %v658 = vmax.f32 %v653, 0.0
    %v659 = vpack.c.bf16 %v658, %v658
    %v660 = vld [vmem:[#allocation7] sm:$0xff]
    %v661 = vld [vmem:[#allocation7 + $0x8] sm:$0xff]
    %v662 = vld [vmem:[#allocation7 + $0x10] sm:$0xff]
    %v663 = vld [vmem:[#allocation7 + $0x18] sm:$0xff]
    %v664 = vld [vmem:[#allocation7 + $0x20] sm:$0xff]
    %v665 = vld [vmem:[#allocation7 + $0x28] sm:$0xff]
    %v666 = vld [vmem:[#allocation7 + $0x30] sm:$0xff]
    %v667 = vld [vmem:[#allocation7 + $0x38] sm:$0xff]
    %v668 = vld [vmem:[#allocation7 + $0x40] sm:$0xff]
    %v669 = vld [vmem:[#allocation7 + $0x48] sm:$0xff]
    %v670 = vld [vmem:[#allocation7 + $0x50] sm:$0xff]
    %v671 = vld [vmem:[#allocation7 + $0x58] sm:$0xff]
    %v672 = vld [vmem:[#allocation7 + $0x60] sm:$0xff]
    %v673 = vld [vmem:[#allocation7 + $0x68] sm:$0xff]
    %v674 = vld [vmem:[#allocation7 + $0x70] sm:$0xff]
    %v675 = vld [vmem:[#allocation7 + $0x78] sm:$0xff]
    %v676 = vld [vmem:[%s4] sm:$0x3]
    %v678 = vlaneseq
    %v679 = vshrl.u32 %v678, 7
    %v680 = vsub.s32 0, %v679
    %v681 = vrot.slane %v676, %v680
    %v682 = vlaneseq
    %v683 = vshrl.u32 %v682, 7
    %v684 = vsub.s32 1, %v683
    %v685 = vrot.slane %v676, %v684
    %v704 = vunpack.c.l.b16 %v660
    %v705 = vunpack.c.h.b16 %v660
    %v706 = vunpack.c.l.b16 %v661
    %v707 = vunpack.c.h.b16 %v661
    %v708 = vunpack.c.l.b16 %v662
    %v709 = vunpack.c.h.b16 %v662
    %v710 = vunpack.c.l.b16 %v663
    %v711 = vunpack.c.h.b16 %v663
    %v712 = vunpack.c.l.b16 %v664
    %v713 = vunpack.c.h.b16 %v664
    %v714 = vunpack.c.l.b16 %v665
    %v715 = vunpack.c.h.b16 %v665
    %v716 = vunpack.c.l.b16 %v666
    %v717 = vunpack.c.h.b16 %v666
    %v718 = vunpack.c.l.b16 %v667
    %v719 = vunpack.c.h.b16 %v667
    %v720 = vunpack.c.l.b16 %v668
    %v721 = vunpack.c.h.b16 %v668
    %v722 = vunpack.c.l.b16 %v669
    %v723 = vunpack.c.h.b16 %v669
    %v724 = vunpack.c.l.b16 %v670
    %v725 = vunpack.c.h.b16 %v670
    %v726 = vunpack.c.l.b16 %v671
    %v727 = vunpack.c.h.b16 %v671
    %v728 = vunpack.c.l.b16 %v672
    %v729 = vunpack.c.h.b16 %v672
    %v730 = vunpack.c.l.b16 %v673
    %v731 = vunpack.c.h.b16 %v673
    %v732 = vunpack.c.l.b16 %v674
    %v733 = vunpack.c.h.b16 %v674
    %v734 = vunpack.c.l.b16 %v675
    %v735 = vunpack.c.h.b16 %v675
    %v736 = vpack.c.b16 %v706, %v704
    %v737 = vpack.c.b16 %v707, %v705
    %v738 = vpack.c.b16 %v710, %v708
    %v739 = vpack.c.b16 %v711, %v709
    %v740 = vpack.c.b16 %v714, %v712
    %v741 = vpack.c.b16 %v715, %v713
    %v742 = vpack.c.b16 %v718, %v716
    %v743 = vpack.c.b16 %v719, %v717
    %v744 = vpack.c.b16 %v722, %v720
    %v745 = vpack.c.b16 %v723, %v721
    %v746 = vpack.c.b16 %v726, %v724
    %v747 = vpack.c.b16 %v727, %v725
    %v748 = vpack.c.b16 %v730, %v728
    %v749 = vpack.c.b16 %v731, %v729
    %v750 = vpack.c.b16 %v734, %v732
    %v751 = vpack.c.b16 %v735, %v733
    %768 = vmatprep.subr.bf16.mxu0 %v737
    %769 = vmatpush1.bf16.msra.mxu0 %v736
    %770 = vmatprep.subr.bf16.mxu0 %v739
    %771 = vmatpush1.bf16.msra.mxu0 %v738
    %772 = vmatprep.subr.bf16.mxu0 %v741
    %773 = vmatpush1.bf16.msra.mxu0 %v740
    %774 = vmatprep.subr.bf16.mxu0 %v743
    %775 = vmatpush1.bf16.msra.mxu0 %v742
    %776 = vmatprep.subr.bf16.mxu0 %v745
    %777 = vmatpush1.bf16.msra.mxu0 %v744
    %778 = vmatprep.subr.bf16.mxu0 %v747
    %779 = vmatpush1.bf16.msra.mxu0 %v746
    %780 = vmatprep.subr.bf16.mxu0 %v749
    %781 = vmatpush1.bf16.msra.mxu0 %v748
    %782 = vmatprep.subr.bf16.mxu0 %v751
    %783 = vmatpush1.bf16.msra.mxu0 %v750
    %784 = vmatprep.subr.bf16.mxu0 0
    %785 = vmatpush1.bf16.msra.mxu0 0
    %786 = vmatprep.subr.bf16.mxu0 0
    %787 = vmatpush1.bf16.msra.mxu0 0
    %788 = vmatprep.subr.bf16.mxu0 0
    %789 = vmatpush1.bf16.msra.mxu0 0
    %790 = vmatprep.subr.bf16.mxu0 0
    %791 = vmatpush1.bf16.msra.mxu0 0
    %792 = vmatprep.subr.bf16.mxu0 0
    %793 = vmatpush1.bf16.msra.mxu0 0
    %794 = vmatprep.subr.bf16.mxu0 0
    %795 = vmatpush1.bf16.msra.mxu0 0
    %796 = vmatprep.subr.bf16.mxu0 0
    %797 = vmatpush1.bf16.msra.mxu0 0
    %798 = vmatprep.subr.bf16.mxu0 0
    %799 = vmatpush1.bf16.msra.mxu0 0
    %800 = vmatprep.mubr.bf16.mxu0 0
    %801 = vmatmul.mubr.bf16.gmra.mrb[0].mxu0 %v659
    %v802 = vpop.f32.mrb[0].mxu0
    %v803 = vadd.f32 %v681, %v802
    %v804 = vpop.f32.mrb[0].mxu0
    %v805 = vadd.f32 %v685, %v804
    %v806 = vpop.f32.mrb[0].mxu0
    %v807 = vpop.f32.mrb[0].mxu0
    %808 = vdwg.mxu0
    %v809 = vmax.f32 %v803, 0.0
    %v810 = vmax.f32 %v805, 0.0
    %v811 = vpack.c.bf16 %v809, %v809
    %v812 = vpack.c.bf16 %v810, %v810
    %v813 = vld [vmem:[#allocation8] sm:$0xf]
    %v814 = vld [vmem:[#allocation8 + $0x4] sm:$0xf]
    %v815 = vld [vmem:[#allocation8 + $0x8] sm:$0xf]
    %v816 = vld [vmem:[#allocation8 + $0xc] sm:$0xf]
    %v817 = vld [vmem:[#allocation8 + $0x10] sm:$0xf]
    %v818 = vld [vmem:[#allocation8 + $0x14] sm:$0xf]
    %v819 = vld [vmem:[#allocation8 + $0x18] sm:$0xf]
    %v820 = vld [vmem:[#allocation8 + $0x1c] sm:$0xf]
    %v821 = vld [vmem:[#allocation8 + $0x20] sm:$0xf]
    %v822 = vld [vmem:[#allocation8 + $0x24] sm:$0xf]
    %v823 = vld [vmem:[#allocation8 + $0x28] sm:$0xf]
    %v824 = vld [vmem:[#allocation8 + $0x2c] sm:$0xf]
    %v825 = vld [vmem:[#allocation8 + $0x30] sm:$0xf]
    %v826 = vld [vmem:[#allocation8 + $0x34] sm:$0xf]
    %v827 = vld [vmem:[#allocation8 + $0x38] sm:$0xf]
    %v828 = vld [vmem:[#allocation8 + $0x3c] sm:$0xf]
    %v829 = vld [vmem:[#allocation8 + $0x40] sm:$0xf]
    %v830 = vld [vmem:[#allocation8 + $0x44] sm:$0xf]
    %v831 = vld [vmem:[#allocation8 + $0x48] sm:$0xf]
    %v832 = vld [vmem:[#allocation8 + $0x4c] sm:$0xf]
    %v833 = vld [vmem:[#allocation8 + $0x50] sm:$0xf]
    %v834 = vld [vmem:[#allocation8 + $0x54] sm:$0xf]
    %v835 = vld [vmem:[#allocation8 + $0x58] sm:$0xf]
    %v836 = vld [vmem:[#allocation8 + $0x5c] sm:$0xf]
    %v837 = vld [vmem:[#allocation8 + $0x60] sm:$0xf]
    %v838 = vld [vmem:[#allocation8 + $0x64] sm:$0xf]
    %v839 = vld [vmem:[#allocation8 + $0x68] sm:$0xf]
    %v840 = vld [vmem:[#allocation8 + $0x6c] sm:$0xf]
    %v841 = vld [vmem:[#allocation8 + $0x70] sm:$0xf]
    %v842 = vld [vmem:[#allocation8 + $0x74] sm:$0xf]
    %v843 = vld [vmem:[#allocation8 + $0x78] sm:$0xf]
    %v844 = vld [vmem:[#allocation8 + $0x7c] sm:$0xf]
    %v845 = vld [vmem:[%s6] sm:$0x1]
    %v847 = vlaneseq
    %v848 = vshrl.u32 %v847, 7
    %v849 = vsub.s32 0, %v848
    %v850 = vrot.slane %v845, %v849
    %v884 = vunpack.c.l.b16 %v813
    %v885 = vunpack.c.l.b16 %v814
    %v886 = vunpack.c.l.b16 %v815
    %v887 = vunpack.c.l.b16 %v816
    %v888 = vunpack.c.l.b16 %v817
    %v889 = vunpack.c.l.b16 %v818
    %v890 = vunpack.c.l.b16 %v819
    %v891 = vunpack.c.l.b16 %v820
    %v892 = vunpack.c.l.b16 %v821
    %v893 = vunpack.c.l.b16 %v822
    %v894 = vunpack.c.l.b16 %v823
    %v895 = vunpack.c.l.b16 %v824
    %v896 = vunpack.c.l.b16 %v825
    %v897 = vunpack.c.l.b16 %v826
    %v898 = vunpack.c.l.b16 %v827
    %v899 = vunpack.c.l.b16 %v828
    %v900 = vunpack.c.l.b16 %v829
    %v901 = vunpack.c.l.b16 %v830
    %v902 = vunpack.c.l.b16 %v831
    %v903 = vunpack.c.l.b16 %v832
    %v904 = vunpack.c.l.b16 %v833
    %v905 = vunpack.c.l.b16 %v834
    %v906 = vunpack.c.l.b16 %v835
    %v907 = vunpack.c.l.b16 %v836
    %v908 = vunpack.c.l.b16 %v837
    %v909 = vunpack.c.l.b16 %v838
    %v910 = vunpack.c.l.b16 %v839
    %v911 = vunpack.c.l.b16 %v840
    %v912 = vunpack.c.l.b16 %v841
    %v913 = vunpack.c.l.b16 %v842
    %v914 = vunpack.c.l.b16 %v843
    %v915 = vunpack.c.l.b16 %v844
    %v916 = vpack.c.b16 %v885, %v884
    %v917 = vpack.c.b16 %v887, %v886
    %v918 = vpack.c.b16 %v889, %v888
    %v919 = vpack.c.b16 %v891, %v890
    %v920 = vpack.c.b16 %v893, %v892
    %v921 = vpack.c.b16 %v895, %v894
    %v922 = vpack.c.b16 %v897, %v896
    %v923 = vpack.c.b16 %v899, %v898
    %v924 = vpack.c.b16 %v901, %v900
    %v925 = vpack.c.b16 %v903, %v902
    %v926 = vpack.c.b16 %v905, %v904
    %v927 = vpack.c.b16 %v907, %v906
    %v928 = vpack.c.b16 %v909, %v908
    %v929 = vpack.c.b16 %v911, %v910
    %v930 = vpack.c.b16 %v913, %v912
    %v931 = vpack.c.b16 %v915, %v914
    %948 = vmatprep.subr.bf16.mxu0 0
    %949 = vmatpush1.bf16.msra.mxu0 %v916
    %950 = vmatprep.subr.bf16.mxu0 0
    %951 = vmatpush1.bf16.msra.mxu0 %v917
    %952 = vmatprep.subr.bf16.mxu0 0
    %953 = vmatpush1.bf16.msra.mxu0 %v918
    %954 = vmatprep.subr.bf16.mxu0 0
    %955 = vmatpush1.bf16.msra.mxu0 %v919
    %956 = vmatprep.subr.bf16.mxu0 0
    %957 = vmatpush1.bf16.msra.mxu0 %v920
    %958 = vmatprep.subr.bf16.mxu0 0
    %959 = vmatpush1.bf16.msra.mxu0 %v921
    %960 = vmatprep.subr.bf16.mxu0 0
    %961 = vmatpush1.bf16.msra.mxu0 %v922
    %962 = vmatprep.subr.bf16.mxu0 0
    %963 = vmatpush1.bf16.msra.mxu0 %v923
    %964 = vmatprep.subr.bf16.mxu0 0
    %965 = vmatpush1.bf16.msra.mxu0 %v924
    %966 = vmatprep.subr.bf16.mxu0 0
    %967 = vmatpush1.bf16.msra.mxu0 %v925
    %968 = vmatprep.subr.bf16.mxu0 0
    %969 = vmatpush1.bf16.msra.mxu0 %v926
    %970 = vmatprep.subr.bf16.mxu0 0
    %971 = vmatpush1.bf16.msra.mxu0 %v927
    %972 = vmatprep.subr.bf16.mxu0 0
    %973 = vmatpush1.bf16.msra.mxu0 %v928
    %974 = vmatprep.subr.bf16.mxu0 0
    %975 = vmatpush1.bf16.msra.mxu0 %v929
    %976 = vmatprep.subr.bf16.mxu0 0
    %977 = vmatpush1.bf16.msra.mxu0 %v930
    %978 = vmatprep.subr.bf16.mxu0 0
    %979 = vmatpush1.bf16.msra.mxu0 %v931
    %980 = vmatprep.mubr.bf16.mxu0 %v812
    %981 = vmatmul.mubr.bf16.gmra.mrb[0].mxu0 %v811
    %v982 = vpop.f32.mrb[0].mxu0
    %v983 = vadd.f32 %v850, %v982
    %v984 = vpop.f32.mrb[0].mxu0
    %v985 = vpop.f32.mrb[0].mxu0
    %v986 = vpop.f32.mrb[0].mxu0
    %987 = vdwg.mxu0
    %v988 = vpack.c.bf16 %v983, %v983
    %989 = vst [vmem:[#allocation10] sm:$0xf] %v988
    // Predicated region
    $region46: #{tpu_custom_call.1} parent=1 // pred_check
      _
    $region47: #{tpu_custom_call.1} parent=1 // pred_check_branch
      %991 = sbr.rel (0) target = $region49
    $region48: #{tpu_custom_call.1} parent=1 // pred_region
      %s993 = ssub.s32 64, 64
      %994 = vsyncadd [#allocation4], %s993
      %s996 = sshll.u32 [#allocation10], 4
      %s997 = int_to_ptr.vmem [resolvable:$true] %s996
      %999 = dma.vmem_to_hbm [thread:$0]  %s997, 64, %s7, [#allocation4]
    $region49: #{tpu_custom_call.1} parent=1 // pred_fallthru
      _
    // Predicated region
    $region50: #{tpu_custom_call.1} parent=1 // pred_check
      _
    $region51: #{tpu_custom_call.1} parent=1 // pred_check_branch
      %1001 = sbr.rel (0) target = $region53
    $region52: #{tpu_custom_call.1} parent=1 // pred_region
      %1002 = dma.done [#allocation4], 64
    $region53: #{tpu_custom_call.1} parent=1 // pred_fallthru
      _
    %1003 = vsyncpa [#allocation3], 1
    %1004 = vsyncpa [#allocation6], 1
    %1005 = vsyncpa [#allocation9], 1
    %1006 = vsyncpa [#allocation4], 1

</llo_original>
